<compile_context>
chip_gen: v7x
topology: tpu7x:2x2x1
jax: 0.10.0
libtpu: 0.0.40
codegen_flags: <defaults>
</compile_context>

<pallas_src>
import functools
import math

import jax
import jax.numpy as jnp
from jax import lax
from jax.experimental import pallas as pl
from jax.experimental.pallas import tpu as pltpu


VMEM_LIMIT = 48 * 1024 * 1024  # explicit per-call limit; safe within v7x's 64 MiB physical VMEM


# ----------------------------------------------------------------------------
# small helpers
# ----------------------------------------------------------------------------
def _pick_tile(dim, candidates):
    for c in candidates:
        if dim >= c and dim % c == 0:
            return c
    return dim  # full-extent block is always legal


def _row_tile(m, dtype):
    # 8-row granularity for 4-byte dtypes, 16 for 2-byte (bf16 sublane packing legality)
    base = 16 if jnp.dtype(dtype).itemsize == 2 else 8
    cands = tuple(c for c in (512, 256, 128, 64, 32, 16, 8) if c % base == 0)
    return _pick_tile(m, cands)


def _cparams(dims):
    return pltpu.CompilerParams(dimension_semantics=dims, vmem_limit_bytes=VMEM_LIMIT)


# ----------------------------------------------------------------------------
# Plain linear: tiled matmul + bias (used for the fused Q|K|V projection)
# ----------------------------------------------------------------------------
def linear_kernel(x_ref, w_ref, b_ref, o_ref, acc_ref, *, activation):
    @pl.when(pl.program_id(2) == 0)
    def _():
        acc_ref[...] = jnp.zeros_like(acc_ref)

    # operands in native dtype (bf16 MXU fast path on v6e/v7x), f32 accumulation
    acc_ref[...] += jnp.dot(x_ref[...], w_ref[...], preferred_element_type=jnp.float32)

    @pl.when(pl.program_id(2) == pl.num_programs(2) - 1)
    def _():
        r = acc_ref[...] + b_ref[...].astype(jnp.float32)
        if activation == "relu":
            r = jnp.maximum(r, 0.0)
        o_ref[...] = r.astype(o_ref.dtype)


def linear(x2, w, b=None, *, activation="none"):
    """(M, K) @ (K, N) + b."""
    M, K = x2.shape
    K2, N = w.shape
    assert K == K2
    if b is None:
        b = jnp.zeros((N,), dtype=x2.dtype)
    b2 = b.reshape(1, N)

    tm = _row_tile(M, x2.dtype)
    tk = _pick_tile(K, (512, 256, 128))
    tn = _pick_tile(N, (512, 256, 128))
    grid = (M // tm, N // tn, K // tk)
    itemsize = jnp.dtype(x2.dtype).itemsize

    return pl.pallas_call(
        functools.partial(linear_kernel, activation=activation),
        out_shape=jax.ShapeDtypeStruct((M, N), x2.dtype),
        grid=grid,
        in_specs=[
            pl.BlockSpec((tm, tk), lambda i, j, k: (i, k)),
            pl.BlockSpec((tk, tn), lambda i, j, k: (k, j)),
            pl.BlockSpec((1, tn), lambda i, j, k: (0, j)),
        ],
        out_specs=pl.BlockSpec((tm, tn), lambda i, j, k: (i, j)),
        scratch_shapes=[pltpu.VMEM((tm, tn), jnp.float32)],
        compiler_params=_cparams(("parallel", "parallel", "arbitrary")),
        cost_estimate=pl.CostEstimate(
            flops=2 * M * K * N, transcendentals=0,
            bytes_accessed=itemsize * (M * K + K * N + M * N)),
    )(x2, w, b2)


# ----------------------------------------------------------------------------
# Attention: fused-QKV input, in-kernel head split, flash-style online softmax
# with masked_softmax (-1e6 fill) semantics.  Output is a lane-dense (S, H) block.
# ----------------------------------------------------------------------------
def attention_kernel(vl_ref, q_ref, kv_ref, o_ref, m_scr, l_scr, acc_scr, *,
                     num_heads, hidden, scale):
    b = pl.program_id(0)
    kv_i = pl.program_id(1)
    dh = hidden // num_heads
    tk = kv_ref.shape[1]

    @pl.when(kv_i == 0)
    def _():
        m_scr[...] = jnp.full(m_scr.shape, -jnp.inf, m_scr.dtype)
        l_scr[...] = jnp.zeros_like(l_scr)
        acc_scr[...] = jnp.zeros_like(acc_scr)

    q_all = q_ref[0]       # (S, 3H): fused QKV rows, Q part used
    kv_all = kv_ref[0]     # (tk, 3H): current KV tile

    # masked_softmax semantics: key positions >= valid_len filled with -1e6 before softmax
    limit = vl_ref[b] - kv_i * tk
    col = lax.broadcasted_iota(jnp.int32, (q_all.shape[0], tk), 1)
    keep = col < limit

    for h in range(num_heads):  # static unroll over heads (no in-kernel transposes)
        qh = q_all[:, h * dh:(h + 1) * dh] * scale          # 1/sqrt(dh) folded into q
        kh = kv_all[:, hidden + h * dh: hidden + (h + 1) * dh]
        vh = kv_all[:, 2 * hidden + h * dh: 2 * hidden + (h + 1) * dh]

        # NT matmul: contract dh of q against dh of k (no k transpose materialized)
        s = lax.dot_general(qh, kh, (((1,), (1,)), ((), ())),
                            preferred_element_type=jnp.float32)
        s = jnp.where(keep, s, jnp.float32(-1e6))

        m_prev = m_scr[h]                                   # (S, 1)
        m_new = jnp.maximum(m_prev, jnp.max(s, axis=-1, keepdims=True))
        alpha = jnp.exp(m_prev - m_new)
        p = jnp.exp(s - m_new)
        l_scr[h] = alpha * l_scr[h] + jnp.sum(p, axis=-1, keepdims=True)
        acc_scr[h] = alpha * acc_scr[h] + jnp.dot(
            p.astype(vh.dtype), vh, preferred_element_type=jnp.float32)
        m_scr[h] = m_new

    @pl.when(kv_i == pl.num_programs(1) - 1)
    def _():
        # TODO(synk): attention-weight dropout (DotProductAttention.dropout) is identity
        # in eval mode; a train-mode mask is not fused here.
        outs = []
        for h in range(num_heads):
            inv_l = pl.reciprocal(l_scr[h], approx=True)
            outs.append(acc_scr[h] * inv_l)
        o_ref[0] = jnp.concatenate(outs, axis=-1).astype(o_ref.dtype)


def dot_product_attention(qkv, valid_lens_b, num_heads):
    """qkv: (B, S, 3H) fused projection output; valid_lens_b: (B,) int32 -> (B, S, H)."""
    B, S, threeH = qkv.shape
    H = threeH // 3
    dh = H // num_heads
    scale = 1.0 / math.sqrt(dh)
    tk = _pick_tile(S, (512, 256, 128))      # KV tile for the online softmax
    nkv = S // tk
    itemsize = jnp.dtype(qkv.dtype).itemsize

    return pl.pallas_call(
        functools.partial(attention_kernel, num_heads=num_heads, hidden=H, scale=scale),
        out_shape=jax.ShapeDtypeStruct((B, S, H), qkv.dtype),
        grid_spec=pltpu.PrefetchScalarGridSpec(
            num_scalar_prefetch=1,
            grid=(B, nkv),
            in_specs=[
                # Q rows (constant block across the KV axis -> fetched once per batch)
                pl.BlockSpec((1, S, threeH), lambda b, kv, vl: (b, 0, 0)),
                # KV tile streamed along the KV axis
                pl.BlockSpec((1, tk, threeH), lambda b, kv, vl: (b, kv, 0)),
            ],
            out_specs=pl.BlockSpec((1, S, H), lambda b, kv, vl: (b, 0, 0)),
            scratch_shapes=[
                pltpu.VMEM((num_heads, S, 1), jnp.float32),    # running max
                pltpu.VMEM((num_heads, S, 1), jnp.float32),    # running sum
                pltpu.VMEM((num_heads, S, dh), jnp.float32),   # running output
            ]),
        compiler_params=_cparams(("parallel", "arbitrary")),
        cost_estimate=pl.CostEstimate(
            flops=4 * B * S * S * H,
            transcendentals=B * num_heads * S * S,
            bytes_accessed=itemsize * (2 * B * S * threeH + B * S * H)),
    )(valid_lens_b, qkv, qkv)


# ----------------------------------------------------------------------------
# Linear (W_o) with AddNorm fused into the epilogue:
#   out = LayerNorm(dropout(x @ W + b) + residual)
# ----------------------------------------------------------------------------
def linear_addnorm_kernel(*refs, eps, has_mask):
    if has_mask:
        x_ref, w_ref, b_ref, res_ref, g_ref, bt_ref, m_ref, o_ref, acc_ref = refs
    else:
        x_ref, w_ref, b_ref, res_ref, g_ref, bt_ref, o_ref, acc_ref = refs
        m_ref = None

    @pl.when(pl.program_id(1) == 0)
    def _():
        acc_ref[...] = jnp.zeros_like(acc_ref)

    acc_ref[...] += jnp.dot(x_ref[...], w_ref[...], preferred_element_type=jnp.float32)

    @pl.when(pl.program_id(1) == pl.num_programs(1) - 1)
    def _():
        y = acc_ref[...] + b_ref[...].astype(jnp.float32)
        if has_mask:
            y = y * m_ref[...].astype(jnp.float32)     # pre-scaled dropout keep mask
        z = y + res_ref[...].astype(jnp.float32)
        mean = jnp.mean(z, axis=-1, keepdims=True)
        c = z - mean
        var = jnp.mean(c * c, axis=-1, keepdims=True)  # biased variance (torch LayerNorm)
        zh = c * lax.rsqrt(var + jnp.float32(eps))
        o_ref[...] = (zh * g_ref[...].astype(jnp.float32)
                      + bt_ref[...].astype(jnp.float32)).astype(o_ref.dtype)


def linear_addnorm(x2, w, b, residual2, gamma, beta, *, mask=None, eps=1e-5):
    M, K = x2.shape
    K2, H = w.shape
    assert K == K2 and residual2.shape == (M, H)
    if b is None:
        b = jnp.zeros((H,), dtype=x2.dtype)
    tm = _row_tile(M, x2.dtype)
    tk = _pick_tile(K, (512, 256, 128))
    grid = (M // tm, K // tk)
    has_mask = mask is not None
    itemsize = jnp.dtype(x2.dtype).itemsize

    inputs = [x2, w, b.reshape(1, H), residual2, gamma.reshape(1, H), beta.reshape(1, H)]
    in_specs = [
        pl.BlockSpec((tm, tk), lambda i, k: (i, k)),
        pl.BlockSpec((tk, H), lambda i, k: (k, 0)),
        pl.BlockSpec((1, H), lambda i, k: (0, 0)),
        pl.BlockSpec((tm, H), lambda i, k: (i, 0)),
        pl.BlockSpec((1, H), lambda i, k: (0, 0)),
        pl.BlockSpec((1, H), lambda i, k: (0, 0)),
    ]
    if has_mask:
        inputs.append(mask)
        in_specs.append(pl.BlockSpec((tm, H), lambda i, k: (i, 0)))

    return pl.pallas_call(
        functools.partial(linear_addnorm_kernel, eps=float(eps), has_mask=has_mask),
        out_shape=jax.ShapeDtypeStruct((M, H), x2.dtype),
        grid=grid,
        in_specs=in_specs,
        out_specs=pl.BlockSpec((tm, H), lambda i, k: (i, 0)),
        scratch_shapes=[pltpu.VMEM((tm, H), jnp.float32)],
        compiler_params=_cparams(("parallel", "arbitrary")),
        cost_estimate=pl.CostEstimate(
            flops=2 * M * K * H + 10 * M * H, transcendentals=M,
            bytes_accessed=itemsize * (M * K + K * H + 3 * M * H)),
    )(*inputs)


# ----------------------------------------------------------------------------
# Fused position-wise FFN (W1 + ReLU + W2) + AddNorm epilogue:
#   out = LayerNorm(dropout(relu(y @ W1 + b1) @ W2 + b2) + y)
# The (tm, ffn_tile) hidden activation never leaves VMEM.
# ----------------------------------------------------------------------------
def ffn_addnorm_kernel(*refs, eps, has_mask):
    if has_mask:
        y_ref, w1_ref, b1_ref, w2_ref, b2_ref, g_ref, bt_ref, m_ref, o_ref, acc_ref = refs
    else:
        y_ref, w1_ref, b1_ref, w2_ref, b2_ref, g_ref, bt_ref, o_ref, acc_ref = refs
        m_ref = None

    f = pl.program_id(1)

    @pl.when(f == 0)
    def _():
        acc_ref[...] = jnp.zeros_like(acc_ref)

    h = jnp.dot(y_ref[...], w1_ref[...], preferred_element_type=jnp.float32)
    h = jnp.maximum(h + b1_ref[...].astype(jnp.float32), 0.0)
    acc_ref[...] += jnp.dot(h.astype(w2_ref.dtype), w2_ref[...],
                            preferred_element_type=jnp.float32)

    @pl.when(f == pl.num_programs(1) - 1)
    def _():
        z = acc_ref[...] + b2_ref[...].astype(jnp.float32)
        if has_mask:
            z = z * m_ref[...].astype(jnp.float32)     # pre-scaled dropout keep mask
        z = z + y_ref[...].astype(jnp.float32)          # residual = FFN input row block
        mean = jnp.mean(z, axis=-1, keepdims=True)
        c = z - mean
        var = jnp.mean(c * c, axis=-1, keepdims=True)
        zh = c * lax.rsqrt(var + jnp.float32(eps))
        o_ref[...] = (zh * g_ref[...].astype(jnp.float32)
                      + bt_ref[...].astype(jnp.float32)).astype(o_ref.dtype)


def ffn_addnorm(y2, w1, b1, w2, b2, gamma, beta, *, mask=None, eps=1e-5):
    M, H = y2.shape
    H2, F = w1.shape
    F2, H3 = w2.shape
    assert H == H2 == H3 and F == F2
    tm = _row_tile(M, y2.dtype)
    tf = _pick_tile(F, (512, 256, 128))
    grid = (M // tm, F // tf)
    has_mask = mask is not None
    itemsize = jnp.dtype(y2.dtype).itemsize

    inputs = [y2, w1, b1.reshape(1, F), w2, b2.reshape(1, H),
              gamma.reshape(1, H), beta.reshape(1, H)]
    in_specs = [
        pl.BlockSpec((tm, H), lambda i, f: (i, 0)),
        pl.BlockSpec((H, tf), lambda i, f: (0, f)),
        pl.BlockSpec((1, tf), lambda i, f: (0, f)),
        pl.BlockSpec((tf, H), lambda i, f: (f, 0)),
        pl.BlockSpec((1, H), lambda i, f: (0, 0)),
        pl.BlockSpec((1, H), lambda i, f: (0, 0)),
        pl.BlockSpec((1, H), lambda i, f: (0, 0)),
    ]
    if has_mask:
        inputs.append(mask)
        in_specs.append(pl.BlockSpec((tm, H), lambda i, f: (i, 0)))

    return pl.pallas_call(
        functools.partial(ffn_addnorm_kernel, eps=float(eps), has_mask=has_mask),
        out_shape=jax.ShapeDtypeStruct((M, H), y2.dtype),
        grid=grid,
        in_specs=in_specs,
        out_specs=pl.BlockSpec((tm, H), lambda i, f: (i, 0)),
        scratch_shapes=[pltpu.VMEM((tm, H), jnp.float32)],
        compiler_params=_cparams(("parallel", "arbitrary")),
        cost_estimate=pl.CostEstimate(
            flops=4 * M * H * F + 10 * M * H, transcendentals=M,
            bytes_accessed=itemsize * (3 * M * H + 2 * H * F)),
    )(*inputs)


# ----------------------------------------------------------------------------
# TransformerEncoder forward (eval-mode dropout unless training=True)
# ----------------------------------------------------------------------------
def make_positional_encoding(max_len, H, dtype=jnp.float32):
    pos = jnp.arange(max_len, dtype=jnp.float32).reshape(-1, 1)
    div = jnp.power(10000.0, jnp.arange(0, H, 2, dtype=jnp.float32) / H)
    angles = pos / div
    P = jnp.zeros((1, max_len, H), jnp.float32)
    P = P.at[:, :, 0::2].set(jnp.sin(angles))
    P = P.at[:, :, 1::2].set(jnp.cos(angles))
    return P.astype(dtype)


def transformer_encoder_forward(params, tokens, valid_lens, *, num_heads,
                                dropout=0.0, training=False, rng=None):
    emb = params["embedding"]
    H = emb.shape[1]
    B, S = tokens.shape
    dtype = emb.dtype

    # Pad the batch once per forward so every row-tiled kernel sees a legal row count
    # (removes the per-linear pad / out[:M] HBM copies of the previous version).
    row_mult = 16 if jnp.dtype(dtype).itemsize == 2 else 8
    Bp = B
    while (Bp * S) % row_mult != 0:
        Bp += 1
    if Bp != B:
        tokens = jnp.pad(tokens, ((0, Bp - B), (0, 0)))
        if valid_lens is not None:
            valid_lens = jnp.pad(valid_lens, (0, Bp - B), constant_values=S)
    M = Bp * S

    # TODO(synk): embedding lookup is a gather; done with jnp.take (no clean rectangular-tile
    # Pallas equivalent at this scale).
    X = jnp.take(emb, tokens, axis=0) * math.sqrt(H)
    X = (X + params["pos_P"][:, :S, :].astype(dtype)).astype(dtype)
    # TODO(synk): PositionalEncoding.dropout is identity in eval mode; not applied in training here.

    if valid_lens is None:
        vl = jnp.full((Bp,), S, dtype=jnp.int32)
    else:
        vl = valid_lens.astype(jnp.int32)

    use_drop = bool(training) and dropout > 0.0

    for layer in params["layers"]:
        X2 = X.reshape(M, H)

        # 1) fused Q|K|V projection: a single matmul, activations read once
        Wqkv = jnp.concatenate([layer["Wq"], layer["Wk"], layer["Wv"]], axis=1)
        qkv = linear(X2, Wqkv).reshape(Bp, S, 3 * H)

        # 2) attention with in-kernel head split (no XLA transposes), lane-dense output
        ctx = dot_product_attention(qkv, vl, num_heads)

        mask1 = mask2 = None
        if use_drop:
            assert rng is not None, "training dropout needs an rng key"
            rng, k1, k2 = jax.random.split(rng, 3)
            inv_keep = jnp.float32(1.0 / (1.0 - dropout))
            mask1 = (jax.random.bernoulli(k1, 1.0 - dropout, (M, H)).astype(jnp.float32)
                     * inv_keep).astype(dtype)
            mask2 = (jax.random.bernoulli(k2, 1.0 - dropout, (M, H)).astype(jnp.float32)
                     * inv_keep).astype(dtype)
            # TODO(synk): drawing these keep-masks in-kernel via pltpu.prng_random_bits would
            # remove this extra HBM stream; kept in the wrapper for robustness/portability.

        # 3) W_o projection with AddNorm1 fused into the epilogue
        Y2 = linear_addnorm(ctx.reshape(M, H), layer["Wo"], None, X2,
                            layer["gamma1"], layer["beta1"], mask=mask1)

        # 4) FFN (W1 + ReLU + W2) fused with AddNorm2; hidden activation stays in VMEM
        X2n = ffn_addnorm(Y2, layer["W1"], layer["b1"], layer["W2"], layer["b2"],
                          layer["gamma2"], layer["beta2"], mask=mask2)
        X = X2n.reshape(Bp, S, H)

    return X[:B]


# ----------------------------------------------------------------------------
# Pure-JAX reference (same math) + parameter init
# ----------------------------------------------------------------------------
def _layernorm_ref(z, gamma, beta, eps=1e-5):
    mean = z.mean(-1, keepdims=True)
    var = ((z - mean) ** 2).mean(-1, keepdims=True)
    return (z - mean) / jnp.sqrt(var + eps) * gamma + beta


def reference_forward(params, tokens, valid_lens, *, num_heads):
    emb = params["embedding"]
    H = emb.shape[1]
    B, S = tokens.shape
    dh = H // num_heads
    X = jnp.take(emb, tokens, axis=0) * math.sqrt(H) + params["pos_P"][:, :S, :]
    for layer in params["layers"]:
        def split(t):
            return t.reshape(B, S, num_heads, dh).transpose(0, 2, 1, 3).reshape(B * num_heads, S, dh)
        q, k, v = split(X @ layer["Wq"]), split(X @ layer["Wk"]), split(X @ layer["Wv"])
        scores = jnp.einsum("bqd,bkd->bqk", q, k) / math.sqrt(dh)
        if valid_lens is not None:
            vl = jnp.repeat(valid_lens.astype(jnp.int32), num_heads)
            mask = jnp.arange(S)[None, None, :] < vl[:, None, None]
            scores = jnp.where(mask, scores, -1e6)
        w = jax.nn.softmax(scores, axis=-1)
        out = jnp.einsum("bqk,bkd->bqd", w, v)
        out = out.reshape(B, num_heads, S, dh).transpose(0, 2, 1, 3).reshape(B, S, H)
        attn = out @ layer["Wo"]
        Y = _layernorm_ref(X + attn, layer["gamma1"], layer["beta1"])
        f = jnp.maximum(Y @ layer["W1"] + layer["b1"], 0.0) @ layer["W2"] + layer["b2"]
        X = _layernorm_ref(Y + f, layer["gamma2"], layer["beta2"])
    return X


def init_params(key, *, vocab, H, ffn_hidden, num_layers, max_len=64):
    keys = jax.random.split(key, 1 + num_layers)
    params = {"embedding": 0.1 * jax.random.normal(keys[0], (vocab, H), jnp.float32),
              "pos_P": make_positional_encoding(max_len, H),
              "layers": []}
    for li in range(num_layers):
        lk = jax.random.split(keys[1 + li], 6)
        s = 1.0 / math.sqrt(H)
        params["layers"].append({
            "Wq": s * jax.random.normal(lk[0], (H, H), jnp.float32),
            "Wk": s * jax.random.normal(lk[1], (H, H), jnp.float32),
            "Wv": s * jax.random.normal(lk[2], (H, H), jnp.float32),
            "Wo": s * jax.random.normal(lk[3], (H, H), jnp.float32),
            "W1": s * jax.random.normal(lk[4], (H, ffn_hidden), jnp.float32),
            "b1": jnp.zeros((ffn_hidden,), jnp.float32),
            "W2": (1.0 / math.sqrt(ffn_hidden)) * jax.random.normal(lk[5], (ffn_hidden, H), jnp.float32),
            "b2": jnp.zeros((H,), jnp.float32),
            "gamma1": jnp.ones((H,), jnp.float32),
            "beta1": jnp.zeros((H,), jnp.float32),
            "gamma2": jnp.ones((H,), jnp.float32),
            "beta2": jnp.zeros((H,), jnp.float32),
        })
    return params


if __name__ == "__main__":
    B, S, H = 2, 8, 32
    num_heads, ffn_hidden, num_layers = 4, 64, 2
    vocab = 50
    dropout_p = 0.1  # nn.Dropout == identity in eval mode

    root = jax.random.PRNGKey(0)
    kparam, ktok, kdrop = jax.random.split(root, 3)
    params = init_params(kparam, vocab=vocab, H=H, ffn_hidden=ffn_hidden,
                         num_layers=num_layers, max_len=64)
    tokens = jax.random.randint(ktok, (B, S), 0, vocab)
    valid_lens = jnp.array([S, 5], dtype=jnp.int32)

    # eval-mode forward (f32 operands) vs pure-JAX reference
    out = transformer_encoder_forward(params, tokens, valid_lens,
                                      num_heads=num_heads, dropout=dropout_p,
                                      training=False)
    out = jax.block_until_ready(out)
    assert out.shape == (B, S, H)

    ref = reference_forward(params, tokens, valid_lens, num_heads=num_heads)
    max_err = float(jnp.max(jnp.abs(out - ref)))
    assert jnp.allclose(out, ref, atol=2e-2, rtol=2e-2), f"max abs err {max_err}"

    # training-mode path: wrapper-generated, pre-scaled dropout keep masks in the fused epilogues
    out_tr = transformer_encoder_forward(params, tokens, valid_lens,
                                         num_heads=num_heads, dropout=0.5,
                                         training=True, rng=kdrop)
    out_tr = jax.block_until_ready(out_tr)
    assert out_tr.shape == (B, S, H)
    assert bool(jnp.all(jnp.isfinite(out_tr)))

    # bf16 operand path (MXU-native on v6e/v7x; f32 accumulation kept inside the kernels)
    params_bf16 = jax.tree_util.tree_map(lambda a: a.astype(jnp.bfloat16), params)
    out_bf16 = transformer_encoder_forward(params_bf16, tokens, valid_lens,
                                           num_heads=num_heads, dropout=dropout_p,
                                           training=False)
    out_bf16 = jax.block_until_ready(out_bf16)
    assert out_bf16.shape == (B, S, H)
    assert bool(jnp.all(jnp.isfinite(out_bf16.astype(jnp.float32))))

    print("KERNEL_OK")
</pallas_src>

<mosaic_0001>
module attributes {stable_mosaic.version = 11 : i64} {
  func.func @linear_kernel(%arg0: i32, %arg1: i32, %arg2: i32, %arg3: memref<16x32xf32, #tpu.memory_space<vmem>>, %arg4: memref<32x96xf32, #tpu.memory_space<vmem>>, %arg5: memref<1x96xf32, #tpu.memory_space<vmem>>, %arg6: memref<16x96xf32, #tpu.memory_space<vmem>>, %arg7: memref<16x96xf32, #tpu.memory_space<vmem>>) attributes {dimension_semantics = [#tpu.dimension_semantics<parallel>, #tpu.dimension_semantics<parallel>, #tpu.dimension_semantics<arbitrary>], iteration_bounds = array<i64: 1, 1, 1>, scalar_prefetch = 0 : i64, scratch_operands = 1 : i64, tpu.core_type = #tpu.core_type<tc>, window_params = [{transform_indices = @transform_0, window_bounds = array<i64: 16, 32>}, {transform_indices = @transform_1, window_bounds = array<i64: 32, 96>}, {transform_indices = @transform_2, window_bounds = array<i64: 1, 96>}, {transform_indices = @transform_3, window_bounds = array<i64: 16, 96>}]} {
    %c0_i32 = arith.constant 0 : i32
    %0 = arith.cmpi eq, %arg2, %c0_i32 : i32
    %1 = arith.extui %0 : i1 to i32
    %c0_i32_0 = arith.constant 0 : i32
    %2 = arith.cmpi ne, %1, %c0_i32_0 : i32
    scf.if %2 {
      %cst_10 = arith.constant 0.000000e+00 : f32
      %12 = vector.broadcast %cst_10 : f32 to vector<16x96xf32>
      %c0_11 = arith.constant 0 : index
      %c0_12 = arith.constant 0 : index
      %13 = vector.load %arg7[%c0_11, %c0_12] : memref<16x96xf32, #tpu.memory_space<vmem>>, vector<16x96xf32>
      tpu.vector_store %arg7[%c0_11, %c0_12], %12 {strides = array<i32>} : memref<16x96xf32, #tpu.memory_space<vmem>>, vector<16x96xf32>,
    } else {
    }
    %c0 = arith.constant 0 : index
    %c0_1 = arith.constant 0 : index
    %3 = vector.load %arg7[%c0, %c0_1] : memref<16x96xf32, #tpu.memory_space<vmem>>, vector<16x96xf32>
    %c0_2 = arith.constant 0 : index
    %c0_3 = arith.constant 0 : index
    %4 = vector.load %arg3[%c0_2, %c0_3] : memref<16x32xf32, #tpu.memory_space<vmem>>, vector<16x32xf32>
    %c0_4 = arith.constant 0 : index
    %c0_5 = arith.constant 0 : index
    %5 = vector.load %arg4[%c0_4, %c0_5] : memref<32x96xf32, #tpu.memory_space<vmem>>, vector<32x96xf32>
    %cst = arith.constant dense<0.000000e+00> : vector<16x96xf32>
    %6 = tpu.matmul %4, %5, %cst {dimension_numbers = #tpu.dot_dimension_numbers<[1], [0], [0], [1], [0, 0, 1, 1], [], []>} : vector<16x32xf32>, vector<32x96xf32>, vector<16x96xf32> -> vector<16x96xf32>
    %7 = arith.addf %3, %6 : vector<16x96xf32>
    %c0_6 = arith.constant 0 : index
    %c0_7 = arith.constant 0 : index
    %8 = vector.load %arg7[%c0_6, %c0_7] : memref<16x96xf32, #tpu.memory_space<vmem>>, vector<16x96xf32>
    tpu.vector_store %arg7[%c0_6, %c0_7], %7 {strides = array<i32>} : memref<16x96xf32, #tpu.memory_space<vmem>>, vector<16x96xf32>,
    %c0_i32_8 = arith.constant 0 : i32
    %9 = arith.cmpi eq, %arg2, %c0_i32_8 : i32
    %10 = arith.extui %9 : i1 to i32
    %c0_i32_9 = arith.constant 0 : i32
    %11 = arith.cmpi ne, %10, %c0_i32_9 : i32
    scf.if %11 {
      %c0_10 = arith.constant 0 : index
      %c0_11 = arith.constant 0 : index
      %12 = vector.load %arg7[%c0_10, %c0_11] : memref<16x96xf32, #tpu.memory_space<vmem>>, vector<16x96xf32>
      %c0_12 = arith.constant 0 : index
      %c0_13 = arith.constant 0 : index
      %13 = vector.load %arg5[%c0_12, %c0_13] : memref<1x96xf32, #tpu.memory_space<vmem>>, vector<1x96xf32>
      %14 = vector.broadcast %13 : vector<1x96xf32> to vector<16x96xf32>
      %15 = arith.addf %12, %14 : vector<16x96xf32>
      %c0_14 = arith.constant 0 : index
      %c0_15 = arith.constant 0 : index
      %16 = vector.load %arg6[%c0_14, %c0_15] : memref<16x96xf32, #tpu.memory_space<vmem>>, vector<16x96xf32>
      tpu.vector_store %arg6[%c0_14, %c0_15], %15 {strides = array<i32>} : memref<16x96xf32, #tpu.memory_space<vmem>>, vector<16x96xf32>,
    } else {
    }
    return
  }
  func.func @transform_0(%arg0: i32, %arg1: i32, %arg2: i32) -> (i32, i32) {
    %c0_i32 = arith.constant 0 : i32
    return %arg0, %arg2 : i32, i32
  }
  func.func @transform_1(%arg0: i32, %arg1: i32, %arg2: i32) -> (i32, i32) {
    %c0_i32 = arith.constant 0 : i32
    return %arg2, %arg1 : i32, i32
  }
  func.func @transform_2(%arg0: i32, %arg1: i32, %arg2: i32) -> (i32, i32) {
    %c0_i32 = arith.constant 0 : i32
    %c0_i32_0 = arith.constant 0 : i32
    return %c0_i32, %arg1 : i32, i32
  }
  func.func @transform_3(%arg0: i32, %arg1: i32, %arg2: i32) -> (i32, i32) {
    %c0_i32 = arith.constant 0 : i32
    return %arg0, %arg1 : i32, i32
  }
}

</mosaic_0001>

<llo_original>
// kernel: tpu_custom_call.1
$region0: #{tpu_custom_call.1}
  #allocation0 [shape = 'u32[]', space=smem, size = 0x4, offset = 0x4, fixed_abs, tag = 'smem constant byte address 0x4 - core index']
  #allocation1 [shape = 'u32[144,128]{1,0:T(1,128)}', space=vmem, size = 0x12000, scoped, tag = 'internal scratch']
  #allocation2 [shape = 'f32[16,96]{1,0:T(8,128)}', space=vmem, size = 0x2000, scoped, tag = 'scratch operand']
  %s0 = inlined_call_operand.hbm [shape: f32[16,32], index: 0, kind: input, shape index: {}]
  %s1 = inlined_call_operand.hbm [shape: f32[32,96], index: 1, kind: input, shape index: {}]
  %s2 = inlined_call_operand.vmem [shape: f32[1,96], index: 2, kind: input, shape index: {}]
  %s3 = inlined_call_operand.hbm [shape: f32[16,96], index: 3, kind: output, shape index: {}]
  %s4 = sld [smem:[#allocation0]]
  $region38: #{tpu_custom_call.1} parent=0
    _
  %s6 = ssub.s32 1, %s4
  %s7 = scalar_select 0, %s6, %s4
  $region1: #{tpu_custom_call.1} parent=0
    #allocation3 [shape = 'u8[8192]{0}', space=vmem, size = 0x2000, scoped, tag = 'input window, operand 0, single buffered']
    #allocation4 [shape = 's32[1]{0}', space=sflag, size = 0x4, scoped, tag = 'scoped memory for tpu_custom_call.1']
    #allocation5 [shape = 's32[1]{0}', space=sflag, size = 0x4, scoped, tag = 'scoped memory for tpu_custom_call.1']
    #allocation6 [shape = 'u8[16384]{0}', space=vmem, size = 0x4000, scoped, tag = 'input window, operand 1, single buffered']
    #allocation7 [shape = 's32[1]{0}', space=sflag, size = 0x4, scoped, tag = 'scoped memory for tpu_custom_call.1']
    #allocation8 [shape = 'u8[8192]{0}', space=vmem, size = 0x2000, scoped, tag = 'output window, operand 0, single buffered']
    %8 = vsyncpa [#allocation4], 0
    %9 = vsyncpa [#allocation7], 0
    %10 = vsyncpa [#allocation5], 0
    // Predicated region
    $region2: #{tpu_custom_call.1} parent=1 // pred_check
      _
    $region3: #{tpu_custom_call.1} parent=1 // pred_check_branch
      %12 = sbr.rel (0) target = $region5
    $region4: #{tpu_custom_call.1} parent=1 // pred_region
      %s14 = ssub.s32 256, 256
      %15 = vsyncadd [#allocation4], %s14
      %s16 = sshll.u32 [#allocation3], 4
      %s17 = int_to_ptr.vmem [resolvable:$true] %s16
      %22 = dma.hbm_to_vmem [thread:$0]  %s0, 256, %s17, [#allocation4], 128, 128, 8
    $region5: #{tpu_custom_call.1} parent=1 // pred_fallthru
      _
    // Predicated region
    $region6: #{tpu_custom_call.1} parent=1 // pred_check
      _
    $region7: #{tpu_custom_call.1} parent=1 // pred_check_branch
      %24 = sbr.rel (0) target = $region9
    $region8: #{tpu_custom_call.1} parent=1 // pred_region
      %s26 = ssub.s32 512, 512
      %27 = vsyncadd [#allocation7], %s26
      %s28 = sshll.u32 [#allocation6], 4
      %s29 = int_to_ptr.vmem [resolvable:$true] %s28
      %34 = dma.hbm_to_vmem [thread:$0]  %s1, 512, %s29, [#allocation7], 128, 128, 8
    $region9: #{tpu_custom_call.1} parent=1 // pred_fallthru
      _
    // Predicated region
    $region10: #{tpu_custom_call.1} parent=1 // pred_check
      _
    $region11: #{tpu_custom_call.1} parent=1 // pred_check_branch
      %36 = sbr.rel (0) target = $region13
    $region12: #{tpu_custom_call.1} parent=1 // pred_region
      _
    $region13: #{tpu_custom_call.1} parent=1 // pred_fallthru
      _
    // Predicated region
    $region14: #{tpu_custom_call.1} parent=1 // pred_check
      _
    $region15: #{tpu_custom_call.1} parent=1 // pred_check_branch
      %38 = sbr.rel (0) target = $region17
    $region16: #{tpu_custom_call.1} parent=1 // pred_region
      %39 = dma.done [#allocation4], 256
    $region17: #{tpu_custom_call.1} parent=1 // pred_fallthru
      _
    // Predicated region
    $region18: #{tpu_custom_call.1} parent=1 // pred_check
      _
    $region19: #{tpu_custom_call.1} parent=1 // pred_check_branch
      %41 = sbr.rel (0) target = $region21
    $region20: #{tpu_custom_call.1} parent=1 // pred_region
      %42 = dma.done [#allocation7], 512
    $region21: #{tpu_custom_call.1} parent=1 // pred_fallthru
      _
    %p43 = scmp.eq.s32.totalorder 0, 0
    // Predicated region
    $region22: #{tpu_custom_call.1} parent=1 // pred_check
      %p44 = pneg %p43
    $region23: #{tpu_custom_call.1} parent=1 // pred_check_branch
      %46 = sbr.rel (%p44) target = $region25
    $region24: #{tpu_custom_call.1} parent=1 // pred_region
      %vm47 = vcmask 785408
      %48 = vst.msk [vmem:[#allocation2] sm:$0xff] %vm47, 0.0
      %49 = vst.msk [vmem:[#allocation2 + $0x8] sm:$0xff] %vm47, 0.0
    $region25: #{tpu_custom_call.1} parent=1 // pred_fallthru
      _
    %v50 = vld [vmem:[#allocation2] sm:$0xff]
    %v51 = vld [vmem:[#allocation2 + $0x8] sm:$0xff]
    %v52 = vld [vmem:[#allocation3] sm:$0xff]
    %v53 = vld [vmem:[#allocation3 + $0x8] sm:$0xff]
    %v54 = vld [vmem:[#allocation6] sm:$0xff]
    %v55 = vld [vmem:[#allocation6 + $0x8] sm:$0xff]
    %v56 = vld [vmem:[#allocation6 + $0x10] sm:$0xff]
    %v57 = vld [vmem:[#allocation6 + $0x18] sm:$0xff]
    %vm58 = vcmask 261120
    %v60 = vsel %vm58, %v52, 0
    %v63 = vsel %vm58, %v53, 0
    %65 = vmatprep.subr.mxu0 0.0
    %66 = vmatpush1.msra.mxu0 %v54
    %67 = vmatprep.subr.mxu0 0.0
    %68 = vmatpush1.msra.mxu0 %v55
    %69 = vmatprep.subr.mxu0 0.0
    %70 = vmatpush1.msra.mxu0 %v56
    %71 = vmatprep.subr.mxu0 0.0
    %72 = vmatpush1.msra.mxu0 %v57
    %73 = vmatprep.subr.mxu0 0.0
    %74 = vmatpush1.msra.mxu0 0.0
    %75 = vmatprep.subr.mxu0 0.0
    %76 = vmatpush1.msra.mxu0 0.0
    %77 = vmatprep.subr.mxu0 0.0
    %78 = vmatpush1.msra.mxu0 0.0
    %79 = vmatprep.subr.mxu0 0.0
    %80 = vmatpush1.msra.mxu0 0.0
    %81 = vmatprep.subr.mxu0 0.0
    %82 = vmatpush1.msra.mxu0 0.0
    %83 = vmatprep.subr.mxu0 0.0
    %84 = vmatpush1.msra.mxu0 0.0
    %85 = vmatprep.subr.mxu0 0.0
    %86 = vmatpush1.msra.mxu0 0.0
    %87 = vmatprep.subr.mxu0 0.0
    %88 = vmatpush1.msra.mxu0 0.0
    %89 = vmatprep.subr.mxu0 0.0
    %90 = vmatpush1.msra.mxu0 0.0
    %91 = vmatprep.subr.mxu0 0.0
    %92 = vmatpush1.msra.mxu0 0.0
    %93 = vmatprep.subr.mxu0 0.0
    %94 = vmatpush1.msra.mxu0 0.0
    %95 = vmatprep.subr.mxu0 0.0
    %96 = vmatpush1.msra.mxu0 0.0
    %97 = vmatprep.subr.mxu0 0.0
    %98 = vmatpush1.msra.mxu0 0.0
    %99 = vmatprep.subr.mxu0 0.0
    %100 = vmatpush1.msra.mxu0 0.0
    %101 = vmatprep.subr.mxu0 0.0
    %102 = vmatpush1.msra.mxu0 0.0
    %103 = vmatprep.subr.mxu0 0.0
    %104 = vmatpush1.msra.mxu0 0.0
    %105 = vmatprep.subr.mxu0 0.0
    %106 = vmatpush1.msra.mxu0 0.0
    %107 = vmatprep.subr.mxu0 0.0
    %108 = vmatpush1.msra.mxu0 0.0
    %109 = vmatprep.subr.mxu0 0.0
    %110 = vmatpush1.msra.mxu0 0.0
    %111 = vmatprep.subr.mxu0 0.0
    %112 = vmatpush1.msra.mxu0 0.0
    %113 = vmatprep.subr.mxu0 0.0
    %114 = vmatpush1.msra.mxu0 0.0
    %115 = vmatprep.subr.mxu0 0.0
    %116 = vmatpush1.msra.mxu0 0.0
    %117 = vmatprep.subr.mxu0 0.0
    %118 = vmatpush1.msra.mxu0 0.0
    %119 = vmatprep.subr.mxu0 0.0
    %120 = vmatpush1.msra.mxu0 0.0
    %121 = vmatprep.subr.mxu0 0.0
    %122 = vmatpush1.msra.mxu0 0.0
    %123 = vmatprep.subr.mxu0 0.0
    %124 = vmatpush1.msra.mxu0 0.0
    %125 = vmatprep.subr.mxu0 0.0
    %126 = vmatpush1.msra.mxu0 0.0
    %127 = vmatprep.subr.mxu0 0.0
    %128 = vmatpush1.msra.mxu0 0.0
    %129 = vmatprep.mubr.f32.mxu0 0.0
    %130 = vmatmul.mubr.f32.gmra.mrb[0].mxu0 %v60
    %v131 = vpop.f32.mrb[0].mxu0
    %v132 = vadd.f32 0.0, %v131
    %v133 = vpop.f32.mrb[0].mxu0
    %134 = vmatprep.mubr.f32.mxu0 0.0
    %135 = vmatmul.mubr.f32.gmra.mrb[0].mxu0 %v63
    %v136 = vpop.f32.mrb[0].mxu0
    %v137 = vadd.f32 0.0, %v136
    %v138 = vpop.f32.mrb[0].mxu0
    %139 = vdwg.mxu0
    %v140 = vadd.f32 %v50, %v132
    %v141 = vadd.f32 %v51, %v137
    %vm142 = vcmask 785408
    %143 = vst.msk [vmem:[#allocation2] sm:$0xff] %vm142, %v140
    %144 = vst.msk [vmem:[#allocation2 + $0x8] sm:$0xff] %vm142, %v141
    // Predicated region
    $region26: #{tpu_custom_call.1} parent=1 // pred_check
      %p145 = pneg %p43
    $region27: #{tpu_custom_call.1} parent=1 // pred_check_branch
      %147 = sbr.rel (%p145) target = $region29
    $region28: #{tpu_custom_call.1} parent=1 // pred_region
      %v148 = vld [vmem:[#allocation2] sm:$0xff]
      %v149 = vld [vmem:[#allocation2 + $0x8] sm:$0xff]
      %v150 = vld [vmem:[%s2] sm:$0x1]
      %v152 = vlaneseq
      %v153 = vshrl.u32 %v152, 7
      %v154 = vsub.s32 0, %v153
      %v155 = vrot.slane %v150, %v154
      %v157 = vadd.f32 %v148, %v155
      %v158 = vadd.f32 %v149, %v155
      %159 = vst.msk [vmem:[#allocation8] sm:$0xff] %vm142, %v157
      %160 = vst.msk [vmem:[#allocation8 + $0x8] sm:$0xff] %vm142, %v158
    $region29: #{tpu_custom_call.1} parent=1 // pred_fallthru
      _
    // Predicated region
    $region30: #{tpu_custom_call.1} parent=1 // pred_check
      _
    $region31: #{tpu_custom_call.1} parent=1 // pred_check_branch
      %162 = sbr.rel (0) target = $region33
    $region32: #{tpu_custom_call.1} parent=1 // pred_region
      %s164 = ssub.s32 256, 256
      %165 = vsyncadd [#allocation5], %s164
      %s166 = sshll.u32 [#allocation8], 4
      %s167 = int_to_ptr.vmem [resolvable:$true] %s166
      %172 = dma.vmem_to_hbm [thread:$0]  %s167, 256, %s3, [#allocation5], 128, 128, 8
    $region33: #{tpu_custom_call.1} parent=1 // pred_fallthru
      _
    // Predicated region
    $region34: #{tpu_custom_call.1} parent=1 // pred_check
      _
    $region35: #{tpu_custom_call.1} parent=1 // pred_check_branch
      %174 = sbr.rel (0) target = $region37
    $region36: #{tpu_custom_call.1} parent=1 // pred_region
      %175 = dma.done [#allocation5], 256
    $region37: #{tpu_custom_call.1} parent=1 // pred_fallthru
      _
    %176 = vsyncpa [#allocation4], 1
    %177 = vsyncpa [#allocation7], 1
    %178 = vsyncpa [#allocation5], 1

</llo_original>
